<compile_context>
chip_gen: v6e
topology: v6e:2x2x1
jax: 0.10.0
libtpu: 0.0.40
codegen_flags: <defaults>
</compile_context>

<pallas_src>
import functools

import jax
import jax.numpy as jnp
from jax.experimental import pallas as pl
from jax.experimental.pallas import tpu as pltpu


def _avg_pool_single_kernel(x_ref, avg_ref, *, inv_s):
    """Whole-S global mean in one shot.

    x_ref:   (1, S, c_tile) block of channels-last tokens for one batch element.
    avg_ref: (1, 1, c_tile) output block.
    """
    tot = jnp.sum(x_ref[...], axis=1, keepdims=True, dtype=jnp.float32)
    avg_ref[...] = (tot * inv_s).astype(avg_ref.dtype)


def _avg_pool_tiled_kernel(x_ref, avg_ref, acc_ref, *, true_s, s_tile, inv_s):
    """Running-sum global average over the token (S) axis, tiled fallback.

    x_ref:   (1, s_tile, c_tile) tile; the last S tile may overhang the array and is
             masked in-kernel (no wrapper padding).
    avg_ref: (1, 1, c_tile) output block (same block for every S step -> resident).
    acc_ref: (1, 1, c_tile) f32 VMEM accumulator scratch.
    """
    s = pl.program_id(2)

    @pl.when(s == 0)
    def _init():
        acc_ref[...] = jnp.zeros_like(acc_ref)

    x = x_ref[...]
    rows_left = true_s - s * s_tile  # >= s_tile except on the partial last tile
    row_idx = jax.lax.broadcasted_iota(jnp.int32, x.shape, 1)
    x = jnp.where(row_idx < rows_left, x, jnp.zeros_like(x))
    acc_ref[...] += jnp.sum(x, axis=1, keepdims=True, dtype=jnp.float32)

    @pl.when(s == pl.num_programs(2) - 1)
    def _finalize():
        avg_ref[...] = (acc_ref[...] * inv_s).astype(avg_ref.dtype)


def _vmem_budget():
    """Per-generation VMEM limit and per-input-tile byte budget (double-buffered)."""
    try:
        cap = int(pltpu.get_tpu_info().vmem_capacity_bytes)
    except Exception:
        cap = 64 * 1024 * 1024  # conservative (v7x per-TC) fallback
    # ~40 MiB on v7x (64 MiB physical), 80 MiB on v5e/v6e (128 MiB physical).
    vmem_limit = max(16 * 1024 * 1024, min(cap * 5 // 8, 80 * 1024 * 1024))
    # 2x double-buffered input tile + small output/scratch headroom must fit.
    tile_budget = max(2 * 1024 * 1024, (vmem_limit - 2 * 1024 * 1024) // 2)
    return vmem_limit, tile_budget


def _choose_s_tile(S, c_tile, itemsize, budget_bytes, max_s_tile=None):
    """S-axis tile: multiple of 8 (sublane), as large as the VMEM budget allows."""
    row_bytes = max(1, c_tile * itemsize)
    cap_rows = max(8, (budget_bytes // row_bytes) // 8 * 8)
    if max_s_tile is not None:
        cap_rows = min(cap_rows, max(8, (max_s_tile // 8) * 8))
    s_padded = -(-S // 8) * 8
    return min(cap_rows, s_padded)


def visual_extractor_forward(encoded_tokens, *, max_s_tile=None):
    """encoded_tokens: (B, D1, D2, D3, C) channels-last tokens from feature_model.

    Returns (patch_feats, avg_feats) with shapes (B, S, C) and (B, C),
    matching the PyTorch VisualExtractor.forward outputs.
    """
    B, D1, D2, D3, C = encoded_tokens.shape
    S = D1 * D2 * D3
    x = encoded_tokens.reshape(B, S, C)  # glue reshape; data already channels-last

    # patch_feats is exactly this flattened view — return it directly, no kernel copy.
    patch_feats = x

    itemsize = jnp.dtype(x.dtype).itemsize
    vmem_limit, tile_budget = _vmem_budget()

    # Megacore channel split: both v7x TensorCores get work even when B == 1.
    if B == 1 and C % 256 == 0:
        c_tile = C // 2  # multiple of 128 by construction
    else:
        c_tile = C
    num_c = C // c_tile

    inv_s = float(1.0 / S)
    cost = pl.CostEstimate(
        flops=B * S * C,
        transcendentals=0,
        bytes_accessed=B * S * C * itemsize + B * C * itemsize,
    )

    full_block_bytes = S * c_tile * itemsize
    use_single_block = (max_s_tile is None or max_s_tile >= S) and (
        full_block_bytes <= tile_budget
    )

    if use_single_block:
        # One (1, S, c_tile) DMA + reduce per (batch, channel-chunk): no S grid axis,
        # no accumulator, no init/finalize branches.
        kernel = functools.partial(_avg_pool_single_kernel, inv_s=inv_s)
        avg = pl.pallas_call(
            kernel,
            out_shape=jax.ShapeDtypeStruct((B, 1, C), x.dtype),
            grid_spec=pltpu.PrefetchScalarGridSpec(
                num_scalar_prefetch=0,
                grid=(B, num_c),
                in_specs=[pl.BlockSpec((1, S, c_tile), lambda b, c: (b, 0, c))],
                out_specs=pl.BlockSpec((1, 1, c_tile), lambda b, c: (b, 0, c)),
            ),
            compiler_params=pltpu.CompilerParams(
                dimension_semantics=("parallel", "parallel"),
                vmem_limit_bytes=vmem_limit,
            ),
            cost_estimate=cost,
        )(x)
    else:
        # Tiled fallback (very large S / f32): big S tiles, in-kernel masking of the
        # ragged last tile (no jnp.pad copy in HBM).
        s_tile = _choose_s_tile(S, c_tile, itemsize, tile_budget, max_s_tile)
        num_s = pl.cdiv(S, s_tile)
        kernel = functools.partial(
            _avg_pool_tiled_kernel, true_s=S, s_tile=s_tile, inv_s=inv_s
        )
        avg = pl.pallas_call(
            kernel,
            out_shape=jax.ShapeDtypeStruct((B, 1, C), x.dtype),
            grid_spec=pltpu.PrefetchScalarGridSpec(
                num_scalar_prefetch=0,
                grid=(B, num_c, num_s),
                in_specs=[
                    pl.BlockSpec((1, s_tile, c_tile), lambda b, c, s: (b, s, c))
                ],
                out_specs=pl.BlockSpec((1, 1, c_tile), lambda b, c, s: (b, 0, c)),
                scratch_shapes=[pltpu.VMEM((1, 1, c_tile), jnp.float32)],
            ),
            compiler_params=pltpu.CompilerParams(
                dimension_semantics=("parallel", "parallel", "arbitrary"),
                vmem_limit_bytes=vmem_limit,
            ),
            cost_estimate=cost,
        )(x)

    # .squeeze().reshape(-1, C) in the reference -> (B, C)
    avg_feats = avg.reshape(B, C)
    return patch_feats, avg_feats


if __name__ == "__main__":

    def check(tokens, **kw):
        patch, avg = visual_extractor_forward(tokens, **kw)
        patch = jax.block_until_ready(patch)
        avg = jax.block_until_ready(avg)
        B, D1, D2, D3, C = tokens.shape
        ref_patch = tokens.reshape(B, D1 * D2 * D3, C)
        ref_avg = ref_patch.astype(jnp.float32).mean(axis=1).astype(tokens.dtype)
        assert patch.shape == ref_patch.shape
        assert avg.shape == (B, C)
        assert jnp.allclose(patch, ref_patch, atol=1e-6)
        assert jnp.allclose(avg, ref_avg, atol=1e-5, rtol=1e-5)

    key = jax.random.PRNGKey(0)
    k1, k2, k3, k4 = jax.random.split(key, 4)

    # 1) Single-block fast path (one DMA + reduce per batch element).
    check(jax.random.normal(k1, (2, 4, 4, 4, 32), dtype=jnp.float32))

    # 2) Tiled path with in-kernel masking of the ragged last S tile (S=60, tile=16).
    check(jax.random.normal(k2, (2, 3, 4, 5, 32), dtype=jnp.float32), max_s_tile=16)

    # 3) B=1 megacore channel split, fast path (C=256 -> two 128-wide blocks).
    check(jax.random.normal(k3, (1, 4, 4, 4, 256), dtype=jnp.float32))

    # 4) B=1 channel split + tiled path + ragged-tail masking combined.
    check(jax.random.normal(k4, (1, 3, 4, 5, 256), dtype=jnp.float32), max_s_tile=16)

    print("KERNEL_OK")
</pallas_src>

<mosaic_0001>
module attributes {stable_mosaic.version = 11 : i64} {
  func.func @_avg_pool_single_kernel(%arg0: i32, %arg1: i32, %arg2: memref<1x64x32xf32, #tpu.memory_space<vmem>>, %arg3: memref<1x1x32xf32, #tpu.memory_space<vmem>>) attributes {dimension_semantics = [#tpu.dimension_semantics<parallel>, #tpu.dimension_semantics<parallel>], iteration_bounds = array<i64: 2, 1>, scalar_prefetch = 0 : i64, scratch_operands = 0 : i64, tpu.core_type = #tpu.core_type<tc>, window_params = [{transform_indices = @transform_0, window_bounds = array<i64: 1, 64, 32>}, {transform_indices = @transform_1, window_bounds = array<i64: 1, 1, 32>}]} {
    %c0 = arith.constant 0 : index
    %c0_0 = arith.constant 0 : index
    %c0_1 = arith.constant 0 : index
    %0 = vector.load %arg2[%c0, %c0_0, %c0_1] : memref<1x64x32xf32, #tpu.memory_space<vmem>>, vector<1x64x32xf32>
    %cst = arith.constant dense<0.000000e+00> : vector<1x32xf32>
    %1 = vector.multi_reduction <add>, %0, %cst [1] : vector<1x64x32xf32> to vector<1x32xf32>
    %2 = vector.shape_cast %1 : vector<1x32xf32> to vector<1x1x32xf32>
    %cst_2 = arith.constant 1.562500e-02 : f32
    %3 = vector.broadcast %cst_2 : f32 to vector<1x1x32xf32>
    %4 = arith.mulf %2, %3 : vector<1x1x32xf32>
    %c0_3 = arith.constant 0 : index
    %c0_4 = arith.constant 0 : index
    %c0_5 = arith.constant 0 : index
    %5 = vector.load %arg3[%c0_3, %c0_4, %c0_5] : memref<1x1x32xf32, #tpu.memory_space<vmem>>, vector<1x1x32xf32>
    tpu.vector_store %arg3[%c0_3, %c0_4, %c0_5], %4 {strides = array<i32>} : memref<1x1x32xf32, #tpu.memory_space<vmem>>, vector<1x1x32xf32>,
    return
  }
  func.func @transform_0(%arg0: i32, %arg1: i32) -> (i32, i32, i32) {
    %c0_i32 = arith.constant 0 : i32
    %c0_i32_0 = arith.constant 0 : i32
    return %arg0, %c0_i32, %arg1 : i32, i32, i32
  }
  func.func @transform_1(%arg0: i32, %arg1: i32) -> (i32, i32, i32) {
    %c0_i32 = arith.constant 0 : i32
    %c0_i32_0 = arith.constant 0 : i32
    return %arg0, %c0_i32, %arg1 : i32, i32, i32
  }
}

</mosaic_0001>

<llo_original>
// kernel: tpu_custom_call.1
$region0: #{tpu_custom_call.1}
  #allocation0 [shape = 'u32[]', space=smem, size = 0x4, offset = 0x4, fixed_abs, tag = 'smem constant byte address 0x4 - core index']
  #allocation1 [shape = 'u32[144,128]{1,0:T(1,128)}', space=vmem, size = 0x12000, scoped, tag = 'internal scratch']
  %s0 = inlined_call_operand.vmem [shape: f32[2,64,32], index: 0, kind: input, shape index: {}]
  %s1 = inlined_call_operand.hbm [shape: f32[2,1,32], index: 1, kind: output, shape index: {}]
  %s2 = sld [smem:[#allocation0]]
  $region37: #{tpu_custom_call.1} parent=0
    _
  %s4 = ssub.s32 1, %s2
  %s5 = scalar_select 0, %s4, %s2
  $region1: #{tpu_custom_call.1} parent=0
    #allocation2 [shape = 'u8[1024]{0}', space=vmem, size = 0x400, scoped, tag = 'output window, operand 0']
    #allocation3 [shape = 's32[2]{0}', space=sflag, size = 0x8, scoped, tag = 'scoped memory for tpu_custom_call.1']
    %6 = vsyncpa [#allocation3], 0
    %s7 = scalar_lea.sflag [#allocation3], 1
    %8 = vsyncpa %s7, 0
    loop: start=0, step=1, limit=4
    $region2: #{tpu_custom_call.1} parent=1 // loop_pre_header
      _
    $region3: #{tpu_custom_call.1} parent=1 // loop_header
      %s10 = sphi 0, %s14
      %p11 = scmp.ge.s32.totalorder %s10, 4
      %s17 = sphi 0, %s29
      %s18 = sphi 0, %s25
      %s19 = sphi 0, %s17
      %s20 = sphi 0, %s18
      %s21 = sphi 0, %s19
      %s22 = sphi 0, %s20
      %s34 = sphi 0, %s36
      %s37 = sphi 0, %s34
      %s38 = sphi 0, %s37
      %s54 = sphi 0, %s38
      %s62 = sphi 0, %s64
      %s65 = sphi 0, %s62
      %s66 = sphi 0, %s65
      %s82 = sphi 0, %s66
    $region4: #{tpu_custom_call.1} parent=1 // loop_header_branch
      %13 = sbr.rel (%p11) target = $region8
    $region5: #{tpu_custom_call.1} parent=1 // loop_body
      %s15 = ssub.s32 %s10, 1
      %s16 = ssub.s32 %s10, 2
      %s23 = sadd.s32 1, %s18
      %p24 = scmp.ge.s32.totalorder %s23, 1
      %s25 = scalar_select %p24, 0, %s23
      %s26 = sadd.s32 1, %s17
      %s27 = scalar_select %p24, %s26, %s17
      %p28 = scmp.ge.s32.totalorder %s27, 2
      %s29 = scalar_select %p28, 0, %s27
      %s30 = ssub.s32 %s17, %s29
      %s31 = ssub.s32 %s18, %s25
      %s32 = sor.u32 %s30, %s31
      %p33 = scmp.eq.s32.totalorder %s32, 0
      %s35 = sadd.s32 %s34, 1
      %s36 = scalar_select %p33, %s34, %s35
      %p39 = pneg %p33
      %p40 = scmp.eq.s32.totalorder %s10, 1
      %p41 = por %p39, %p40
      %p42 = scmp.ne.s32.totalorder %s34, %s37
      %p43 = scmp.eq.s32.totalorder %s10, 0
      %p44 = por %p42, %p43
      %p45 = scmp.ne.s32.totalorder %s34, %s37
      %p46 = scmp.eq.s32.totalorder %s15, 1
      %p47 = por %p45, %p46
      %p48 = scmp.ne.s32.totalorder %s37, %s38
      %p49 = scmp.eq.s32.totalorder %s15, 0
      %p50 = por %p48, %p49
      %p51 = scmp.ne.s32.totalorder %s37, %s38
      %p52 = scmp.eq.s32.totalorder %s16, 1
      %p53 = por %p51, %p52
      %p55 = scmp.ne.s32.totalorder %s38, %s54
      %p56 = scmp.eq.s32.totalorder %s16, 0
      %p57 = por %p55, %p56
      %s58 = ssub.s32 %s17, %s29
      %s59 = ssub.s32 %s18, %s25
      %s60 = sor.u32 %s58, %s59
      %p61 = scmp.eq.s32.totalorder %s60, 0
      %s63 = sadd.s32 %s62, 1
      %s64 = scalar_select %p61, %s62, %s63
      %p67 = pneg %p61
      %p68 = scmp.eq.s32.totalorder %s10, 1
      %p69 = por %p67, %p68
      %p70 = scmp.ne.s32.totalorder %s62, %s65
      %p71 = scmp.eq.s32.totalorder %s10, 0
      %p72 = por %p70, %p71
      %p73 = scmp.ne.s32.totalorder %s62, %s65
      %p74 = scmp.eq.s32.totalorder %s15, 1
      %p75 = por %p73, %p74
      %p76 = scmp.ne.s32.totalorder %s65, %s66
      %p77 = scmp.eq.s32.totalorder %s15, 0
      %p78 = por %p76, %p77
      %p79 = scmp.ne.s32.totalorder %s65, %s66
      %p80 = scmp.eq.s32.totalorder %s16, 1
      %p81 = por %p79, %p80
      %p83 = scmp.ne.s32.totalorder %s66, %s82
      %p84 = scmp.eq.s32.totalorder %s16, 0
      %p85 = por %p83, %p84
      %p86 = scmp.le.s32.totalorder 1, %s10
      %p87 = scmp.lt.s32.totalorder %s10, 3
      %p88 = pnand %p86, %p87
      %p89 = pneg %p88
      // Predicated region
      $region9: #{tpu_custom_call.1} parent=5 // pred_check
        _
      $region10: #{tpu_custom_call.1} parent=5 // pred_check_branch
        %91 = sbr.rel (%p88) target = $region12
      $region11: #{tpu_custom_call.1} parent=5 // pred_region
        %s92 = ssub.s32 %s10, 1
      $region12: #{tpu_custom_call.1} parent=5 // pred_fallthru
        _
      %p93 = scmp.lt.s32.totalorder %s10, 2
      // Predicated region
      $region13: #{tpu_custom_call.1} parent=5 // pred_check
        %p94 = pneg %p93
      $region14: #{tpu_custom_call.1} parent=5 // pred_check_branch
        %96 = sbr.rel (%p94) target = $region16
      $region15: #{tpu_custom_call.1} parent=5 // pred_region
        // Predicated region
        $region17: #{tpu_custom_call.1} parent=15 // pred_check
          %p97 = pneg %p44
        $region18: #{tpu_custom_call.1} parent=15 // pred_check_branch
          %99 = sbr.rel (%p97) target = $region20
        $region19: #{tpu_custom_call.1} parent=15 // pred_region
          %p100 = scmp.lt.s32.totalorder %s17, 1
          %s101 = scalar_select %p100, %s17, 1
          %p102 = scmp.lt.s32.totalorder %s18, 0
          %s103 = scalar_select %p102, %s18, 0
          %s104 = smul.addr %s101, 8
          %s105 = sadd.s32 %s103, %s104
          %s106 = smul.addr %s105, 8
          %s107 = scalar_lea.vmem %s0, %s106
        $region20: #{tpu_custom_call.1} parent=15 // pred_fallthru
          _
      $region16: #{tpu_custom_call.1} parent=5 // pred_fallthru
        _
      %p108 = scmp.le.s32.totalorder 1, %s10
      %p109 = scmp.lt.s32.totalorder %s10, 3
      %p110 = pnand %p108, %p109
      %p111 = pneg %p110
      // Predicated region
      $region21: #{tpu_custom_call.1} parent=5 // pred_check
        _
      $region22: #{tpu_custom_call.1} parent=5 // pred_check_branch
        %113 = sbr.rel (%p110) target = $region24
      $region23: #{tpu_custom_call.1} parent=5 // pred_region
        %s114 = ssub.s32 %s10, 1
        %p115 = scmp.lt.s32.totalorder %s19, 1
        %s116 = scalar_select %p115, %s19, 1
        %p117 = scmp.lt.s32.totalorder %s20, 0
        %s118 = scalar_select %p117, %s20, 0
        %s119 = smul.addr %s116, 8
        %s120 = sadd.s32 %s118, %s119
        %s121 = smul.addr %s120, 8
        %s122 = scalar_lea.vmem %s0, %s121
        %p123 = pneg %p50
        %p124 = pneg %p47
        %p125 = pneg %p78
        %p126 = pneg %p75
        %s127 = sand.u32 %s65, 1
        %s128 = scalar_lea.sflag [#allocation3], %s127
        %s129 = sand.u32 %s65, 1
        %s130 = scalar_lea.vmem [#allocation2], %s129
        %p131 = scmp.lt.s32.totalorder %s19, 1
        %s132 = scalar_select %p131, %s19, 1
        %p133 = scmp.lt.s32.totalorder %s20, 0
        %s134 = scalar_select %p133, %s20, 0
        %s135 = smul.addr %s132, 8
        %s136 = sadd.s32 %s134, %s135
        %s137 = smul.addr %s136, 8
        %s138 = scalar_lea.vmem %s0, %s137
        %v139 = vld [vmem:[%s138] sm:$0xff]
        %v140 = vld [vmem:[%s138 + $0x8] sm:$0xff]
        %v141 = vld [vmem:[%s138 + $0x10] sm:$0xff]
        %v142 = vld [vmem:[%s138 + $0x18] sm:$0xff]
        %v143 = vld [vmem:[%s138 + $0x20] sm:$0xff]
        %v144 = vld [vmem:[%s138 + $0x28] sm:$0xff]
        %v145 = vld [vmem:[%s138 + $0x30] sm:$0xff]
        %v146 = vld [vmem:[%s138 + $0x38] sm:$0xff]
        %vm147 = vcmask 261120
        %v148 = vsel %vm147, %v139, 0.0
        %v149 = vsel %vm147, %v140, 0.0
        %v150 = vadd.f32 %v148, %v149
        %v151 = vsel %vm147, %v141, 0.0
        %v152 = vadd.f32 %v150, %v151
        %v153 = vsel %vm147, %v142, 0.0
        %v154 = vadd.f32 %v152, %v153
        %v155 = vsel %vm147, %v143, 0.0
        %v156 = vadd.f32 %v154, %v155
        %v157 = vsel %vm147, %v144, 0.0
        %v158 = vadd.f32 %v156, %v157
        %v159 = vsel %vm147, %v145, 0.0
        %v160 = vadd.f32 %v158, %v159
        %v161 = vsel %vm147, %v146, 0.0
        %v162 = vadd.f32 %v160, %v161
        %v163 = vrot.slane %v162, 4
        %v164 = vadd.f32 %v162, %v163
        %v165 = vrot.slane %v164, 2
        %v166 = vadd.f32 %v164, %v165
        %v167 = vrot.slane %v166, 1
        %v168 = vadd.f32 %v166, %v167
        %v169 = vmul.f32 %v168, 0.015625
        %vm170 = vcmask 253952
        %171 = vst.msk [vmem:[%s130] sm:$0x1] %vm170, %v169
        %s172 = sand.u32 %s65, 1
        %s173 = scalar_lea.sflag [#allocation3], %s172
        %s174 = sand.u32 %s65, 1
        %s175 = scalar_lea.vmem [#allocation2], %s174
        // Predicated region
        $region25: #{tpu_custom_call.1} parent=23 // pred_check
          %p176 = pneg %p75
        $region26: #{tpu_custom_call.1} parent=23 // pred_check_branch
          %178 = sbr.rel (%p176) target = $region28
        $region27: #{tpu_custom_call.1} parent=23 // pred_region
          %s180 = ssub.s32 16, 16
          %181 = vsyncadd %s173, %s180
          %s182 = sadd.s32 %s20, %s19
          %s183 = smul.addr %s182, 16
          %s184 = scalar_lea.hbm %s1, %s183
          %s186 = sshll.u32 %s175, 4
          %s187 = int_to_ptr.vmem [resolvable:$true] %s186
          %189 = dma.vmem_to_hbm [thread:$0]  %s187, 16, %s184, %s173
        $region28: #{tpu_custom_call.1} parent=23 // pred_fallthru
          _
      $region24: #{tpu_custom_call.1} parent=5 // pred_fallthru
        _
      %p190 = scmp.le.s32.totalorder 2, %s10
      // Predicated region
      $region29: #{tpu_custom_call.1} parent=5 // pred_check
        %p191 = pneg %p190
      $region30: #{tpu_custom_call.1} parent=5 // pred_check_branch
        %193 = sbr.rel (%p191) target = $region32
      $region31: #{tpu_custom_call.1} parent=5 // pred_region
        %s194 = ssub.s32 %s10, 2
        // Predicated region
        $region33: #{tpu_custom_call.1} parent=31 // pred_check
          %p195 = pneg %p81
        $region34: #{tpu_custom_call.1} parent=31 // pred_check_branch
          %197 = sbr.rel (%p195) target = $region36
        $region35: #{tpu_custom_call.1} parent=31 // pred_region
          %s198 = sand.u32 %s66, 1
          %s199 = scalar_lea.sflag [#allocation3], %s198
          %s200 = sand.u32 %s66, 1
          %s201 = scalar_lea.vmem [#allocation2], %s200
          %202 = dma.done %s199, 16
        $region36: #{tpu_custom_call.1} parent=31 // pred_fallthru
          _
      $region32: #{tpu_custom_call.1} parent=5 // pred_fallthru
        _
    $region6: #{tpu_custom_call.1} parent=1 // loop_footer
      %s14 = sadd.s32 1, %s10
    $region7: #{tpu_custom_call.1} parent=1 // loop_footer_branch
      %9 = sbr.rel target = $region3
    $region8: #{tpu_custom_call.1} parent=1 // loop_exit
      _
    %203 = vsyncpa [#allocation3], 1
    %s204 = scalar_lea.sflag [#allocation3], 1
    %205 = vsyncpa %s204, 1

</llo_original>
